<compile_context>
chip_gen: v6e
topology: v6e:2x2x1
jax: 0.10.0
libtpu: 0.0.40
codegen_flags: <defaults>
</compile_context>

<pallas_src>
import math
import functools

import jax
import jax.numpy as jnp
from jax.experimental import pallas as pl
from jax.experimental.pallas import tpu as pltpu


def _gate_kernel(w_ref, u_ref, x_ref, h_ref, b_ref, o_ref, acc_ref, *,
                 activation):
    """One (tm, tn) output tile; K-reduction over grid axis 2."""
    k = pl.program_id(2)

    contrib = jnp.dot(w_ref[...], x_ref[...],
                      preferred_element_type=jnp.float32)
    contrib = contrib + jnp.dot(u_ref[...], h_ref[...],
                                preferred_element_type=jnp.float32)

    @pl.when(k == 0)
    def _init():
        acc_ref[...] = contrib          # write, no zero-fill + add

    @pl.when(k > 0)
    def _accumulate():
        acc_ref[...] += contrib

    @pl.when(k == pl.num_programs(2) - 1)
    def _finalize():
        pre = acc_ref[...] + b_ref[...].astype(jnp.float32)
        o_ref[...] = activation(pre).astype(o_ref.dtype)


def _round_up(x, m):
    return ((x + m - 1) // m) * m


def _pad2(a, r, c):
    pr, pc = r - a.shape[0], c - a.shape[1]
    if pr == 0 and pc == 0:
        return a
    return jnp.pad(a, ((0, pr), (0, pc)))


def mat_gru_gate(W, U, bias, x, hidden, *, activation=jax.nn.sigmoid,
                 compute_dtype=None):
    """out = activation(W @ x + U @ hidden + bias), one fused Pallas call."""
    rows, cols = x.shape
    assert W.shape == (rows, rows)
    assert U.shape == (rows, rows)
    assert bias.shape == (rows, cols)
    assert hidden.shape == (rows, cols)
    out_dtype = x.dtype

    # ---- tile selection (bounded VMEM, any shape) --------------------------
    # rows plays two roles: the M dim of W/bias/out and the K dim of W/x.
    # Using tm == tk when rows is large keeps a single padded_rows valid for
    # both roles.
    if rows <= 512:
        p_rows = rows
        tm = tk = rows                         # full-extent blocks (exempt)
        # v7x has 2 TensorCores: ensure a "parallel" axis has >= 2 blocks
        # when the problem is big enough to care (skip tiny shapes).
        if cols <= 512 and rows >= 256 and rows % 16 == 0:
            tm = rows // 2                     # multiple of 8, divides rows
    else:
        tm = tk = 256
        p_rows = _round_up(rows, 256)
    if cols <= 512:
        p_cols = cols
        tn = cols                              # full-extent block (exempt)
    else:
        tn = 512
        p_cols = _round_up(cols, 512)

    grid = (p_rows // tm, p_cols // tn, p_rows // tk)

    # ---- zero-pad to tile multiples (exact: padded K contributes zero) -----
    Wp = _pad2(W, p_rows, p_rows)
    Up = _pad2(U, p_rows, p_rows)
    xp = _pad2(x, p_rows, p_cols)
    hp = _pad2(hidden, p_rows, p_cols)
    bp = _pad2(bias, p_rows, p_cols)
    if compute_dtype is not None:              # e.g. jnp.bfloat16 on v6e/v7x
        Wp = Wp.astype(compute_dtype)
        Up = Up.astype(compute_dtype)
        xp = xp.astype(compute_dtype)
        hp = hp.astype(compute_dtype)

    kernel = functools.partial(_gate_kernel, activation=activation)

    out = pl.pallas_call(
        kernel,
        out_shape=jax.ShapeDtypeStruct((p_rows, p_cols), out_dtype),
        grid_spec=pltpu.PrefetchScalarGridSpec(
            num_scalar_prefetch=0,
            grid=grid,
            in_specs=[
                pl.BlockSpec((tm, tk), lambda i, j, k: (i, k)),  # W
                pl.BlockSpec((tm, tk), lambda i, j, k: (i, k)),  # U
                pl.BlockSpec((tk, tn), lambda i, j, k: (k, j)),  # x
                pl.BlockSpec((tk, tn), lambda i, j, k: (k, j)),  # hidden
                pl.BlockSpec((tm, tn), lambda i, j, k: (i, j)),  # bias
            ],
            out_specs=pl.BlockSpec((tm, tn), lambda i, j, k: (i, j)),
            scratch_shapes=[pltpu.VMEM((tm, tn), jnp.float32)],
        ),
        compiler_params=pltpu.CompilerParams(
            dimension_semantics=("parallel", "parallel", "arbitrary"),
            vmem_limit_bytes=32 * 1024 * 1024,
        ),
    )(Wp, Up, xp, hp, bp)

    if (p_rows, p_cols) != (rows, cols):
        out = out[:rows, :cols]
    return out


if __name__ == "__main__":
    key = jax.random.PRNGKey(0)

    def make_inputs(rows, cols):
        k_w, k_u, k_x, k_h = jax.random.split(
            jax.random.fold_in(key, rows * 1000 + cols), 4
        )
        # Mirrors reset_param: U(-stdv, stdv), stdv = 1/sqrt(rows);
        # bias initialized to zeros.
        stdv = 1.0 / math.sqrt(rows)
        W = jax.random.uniform(k_w, (rows, rows), jnp.float32, -stdv, stdv)
        U = jax.random.uniform(k_u, (rows, rows), jnp.float32, -stdv, stdv)
        bias = jnp.zeros((rows, cols), jnp.float32)
        x = jax.random.normal(k_x, (rows, cols), jnp.float32)
        hidden = jax.random.normal(k_h, (rows, cols), jnp.float32)
        return W, U, bias, x, hidden

    def run_case(rows, cols, activation, act_ref, compute_dtype=None,
                 atol=1e-5, rtol=1e-5):
        W, U, bias, x, hidden = make_inputs(rows, cols)
        out = mat_gru_gate(W, U, bias, x, hidden, activation=activation,
                           compute_dtype=compute_dtype)
        out = jax.block_until_ready(out)
        ref = act_ref(W @ x + U @ hidden + bias)
        assert out.shape == (rows, cols)
        assert jnp.allclose(out, ref, atol=atol, rtol=rtol), (
            f"mismatch vs reference at rows={rows}, cols={cols}, "
            f"compute_dtype={compute_dtype}"
        )

    # Original module-sized case (rows=32, cols=16): correctness at the
    # shapes the PyTorch module implies (masked stores, but tiny).
    run_case(32, 16, jax.nn.sigmoid, jax.nn.sigmoid)

    # Lane-dense case (cols = 128): unmasked stores -- the recommended
    # production layout.
    run_case(32, 128, jax.nn.sigmoid, jax.nn.sigmoid)

    # The module is also used with tanh (htilda gate).
    run_case(64, 128, jnp.tanh, jnp.tanh)

    # Larger, non-aligned case exercising the padding / tiled-K / multi-block
    # M path with the bf16 MXU compute path (f32 accumulation inside).
    run_case(640, 256, jax.nn.sigmoid, jax.nn.sigmoid,
             compute_dtype=jnp.bfloat16, atol=2e-2, rtol=2e-2)

    print("KERNEL_OK")
</pallas_src>

<mosaic_0001>
module attributes {stable_mosaic.version = 11 : i64} {
  func.func @_gate_kernel(%arg0: i32, %arg1: i32, %arg2: i32, %arg3: memref<32x32xf32, #tpu.memory_space<vmem>>, %arg4: memref<32x32xf32, #tpu.memory_space<vmem>>, %arg5: memref<32x16xf32, #tpu.memory_space<vmem>>, %arg6: memref<32x16xf32, #tpu.memory_space<vmem>>, %arg7: memref<32x16xf32, #tpu.memory_space<vmem>>, %arg8: memref<32x16xf32, #tpu.memory_space<vmem>>, %arg9: memref<32x16xf32, #tpu.memory_space<vmem>>) attributes {dimension_semantics = [#tpu.dimension_semantics<parallel>, #tpu.dimension_semantics<parallel>, #tpu.dimension_semantics<arbitrary>], iteration_bounds = array<i64: 1, 1, 1>, scalar_prefetch = 0 : i64, scratch_operands = 1 : i64, tpu.core_type = #tpu.core_type<tc>, window_params = [{transform_indices = @transform_0, window_bounds = array<i64: 32, 32>}, {transform_indices = @transform_1, window_bounds = array<i64: 32, 32>}, {transform_indices = @transform_2, window_bounds = array<i64: 32, 16>}, {transform_indices = @transform_3, window_bounds = array<i64: 32, 16>}, {transform_indices = @transform_4, window_bounds = array<i64: 32, 16>}, {transform_indices = @transform_5, window_bounds = array<i64: 32, 16>}]} {
    %c0 = arith.constant 0 : index
    %c0_0 = arith.constant 0 : index
    %0 = vector.load %arg3[%c0, %c0_0] : memref<32x32xf32, #tpu.memory_space<vmem>>, vector<32x32xf32>
    %c0_1 = arith.constant 0 : index
    %c0_2 = arith.constant 0 : index
    %1 = vector.load %arg5[%c0_1, %c0_2] : memref<32x16xf32, #tpu.memory_space<vmem>>, vector<32x16xf32>
    %cst = arith.constant dense<0.000000e+00> : vector<32x16xf32>
    %2 = tpu.matmul %0, %1, %cst {dimension_numbers = #tpu.dot_dimension_numbers<[1], [0], [0], [1], [0, 0, 1, 1], [], []>} : vector<32x32xf32>, vector<32x16xf32>, vector<32x16xf32> -> vector<32x16xf32>
    %c0_3 = arith.constant 0 : index
    %c0_4 = arith.constant 0 : index
    %3 = vector.load %arg4[%c0_3, %c0_4] : memref<32x32xf32, #tpu.memory_space<vmem>>, vector<32x32xf32>
    %c0_5 = arith.constant 0 : index
    %c0_6 = arith.constant 0 : index
    %4 = vector.load %arg6[%c0_5, %c0_6] : memref<32x16xf32, #tpu.memory_space<vmem>>, vector<32x16xf32>
    %cst_7 = arith.constant dense<0.000000e+00> : vector<32x16xf32>
    %5 = tpu.matmul %3, %4, %cst_7 {dimension_numbers = #tpu.dot_dimension_numbers<[1], [0], [0], [1], [0, 0, 1, 1], [], []>} : vector<32x32xf32>, vector<32x16xf32>, vector<32x16xf32> -> vector<32x16xf32>
    %6 = arith.addf %2, %5 : vector<32x16xf32>
    %c0_i32 = arith.constant 0 : i32
    %7 = arith.cmpi eq, %arg2, %c0_i32 : i32
    %8 = arith.extui %7 : i1 to i32
    %c0_i32_8 = arith.constant 0 : i32
    %9 = arith.cmpi ne, %8, %c0_i32_8 : i32
    scf.if %9 {
      %c0_13 = arith.constant 0 : index
      %c0_14 = arith.constant 0 : index
      %16 = vector.load %arg9[%c0_13, %c0_14] : memref<32x16xf32, #tpu.memory_space<vmem>>, vector<32x16xf32>
      tpu.vector_store %arg9[%c0_13, %c0_14], %6 {strides = array<i32>} : memref<32x16xf32, #tpu.memory_space<vmem>>, vector<32x16xf32>,
    } else {
    }
    %c0_i32_9 = arith.constant 0 : i32
    %10 = arith.cmpi sgt, %arg2, %c0_i32_9 : i32
    %11 = arith.extui %10 : i1 to i32
    %c0_i32_10 = arith.constant 0 : i32
    %12 = arith.cmpi ne, %11, %c0_i32_10 : i32
    scf.if %12 {
      %c0_13 = arith.constant 0 : index
      %c0_14 = arith.constant 0 : index
      %16 = vector.load %arg9[%c0_13, %c0_14] : memref<32x16xf32, #tpu.memory_space<vmem>>, vector<32x16xf32>
      %17 = arith.addf %16, %6 : vector<32x16xf32>
      %c0_15 = arith.constant 0 : index
      %c0_16 = arith.constant 0 : index
      %18 = vector.load %arg9[%c0_15, %c0_16] : memref<32x16xf32, #tpu.memory_space<vmem>>, vector<32x16xf32>
      tpu.vector_store %arg9[%c0_15, %c0_16], %17 {strides = array<i32>} : memref<32x16xf32, #tpu.memory_space<vmem>>, vector<32x16xf32>,
    } else {
    }
    %c0_i32_11 = arith.constant 0 : i32
    %13 = arith.cmpi eq, %arg2, %c0_i32_11 : i32
    %14 = arith.extui %13 : i1 to i32
    %c0_i32_12 = arith.constant 0 : i32
    %15 = arith.cmpi ne, %14, %c0_i32_12 : i32
    scf.if %15 {
      %c0_13 = arith.constant 0 : index
      %c0_14 = arith.constant 0 : index
      %16 = vector.load %arg9[%c0_13, %c0_14] : memref<32x16xf32, #tpu.memory_space<vmem>>, vector<32x16xf32>
      %c0_15 = arith.constant 0 : index
      %c0_16 = arith.constant 0 : index
      %17 = vector.load %arg7[%c0_15, %c0_16] : memref<32x16xf32, #tpu.memory_space<vmem>>, vector<32x16xf32>
      %18 = arith.addf %16, %17 : vector<32x16xf32>
      %19 = arith.negf %18 : vector<32x16xf32>
      %20 = math.exp %19 : vector<32x16xf32>
      %cst_17 = arith.constant 1.000000e+00 : f32
      %21 = vector.broadcast %cst_17 : f32 to vector<32x16xf32>
      %22 = arith.addf %21, %20 : vector<32x16xf32>
      %23 = arith.divf %21, %22 : vector<32x16xf32>
      %c0_18 = arith.constant 0 : index
      %c0_19 = arith.constant 0 : index
      %24 = vector.load %arg8[%c0_18, %c0_19] : memref<32x16xf32, #tpu.memory_space<vmem>>, vector<32x16xf32>
      tpu.vector_store %arg8[%c0_18, %c0_19], %23 {strides = array<i32>} : memref<32x16xf32, #tpu.memory_space<vmem>>, vector<32x16xf32>,
    } else {
    }
    return
  }
  func.func @transform_0(%arg0: i32, %arg1: i32, %arg2: i32) -> (i32, i32) {
    %c0_i32 = arith.constant 0 : i32
    return %arg0, %arg2 : i32, i32
  }
  func.func @transform_1(%arg0: i32, %arg1: i32, %arg2: i32) -> (i32, i32) {
    %c0_i32 = arith.constant 0 : i32
    return %arg0, %arg2 : i32, i32
  }
  func.func @transform_2(%arg0: i32, %arg1: i32, %arg2: i32) -> (i32, i32) {
    %c0_i32 = arith.constant 0 : i32
    return %arg2, %arg1 : i32, i32
  }
  func.func @transform_3(%arg0: i32, %arg1: i32, %arg2: i32) -> (i32, i32) {
    %c0_i32 = arith.constant 0 : i32
    return %arg2, %arg1 : i32, i32
  }
  func.func @transform_4(%arg0: i32, %arg1: i32, %arg2: i32) -> (i32, i32) {
    %c0_i32 = arith.constant 0 : i32
    return %arg0, %arg1 : i32, i32
  }
  func.func @transform_5(%arg0: i32, %arg1: i32, %arg2: i32) -> (i32, i32) {
    %c0_i32 = arith.constant 0 : i32
    return %arg0, %arg1 : i32, i32
  }
}

</mosaic_0001>

<llo_original>
// kernel: tpu_custom_call.1
$region0: #{tpu_custom_call.1}
  #allocation0 [shape = 'u32[]', space=smem, size = 0x4, offset = 0x4, fixed_abs, tag = 'smem constant byte address 0x4 - core index']
  #allocation1 [shape = 'u32[144,128]{1,0:T(1,128)}', space=vmem, size = 0x12000, scoped, tag = 'internal scratch']
  #allocation2 [shape = 'f32[32,16]{1,0:T(8,128)}', space=vmem, size = 0x4000, scoped, tag = 'scratch operand']
  %s0 = inlined_call_operand.vmem [shape: f32[32,32], index: 0, kind: input, shape index: {}]
  %s1 = inlined_call_operand.vmem [shape: f32[32,32], index: 1, kind: input, shape index: {}]
  %s2 = inlined_call_operand.vmem [shape: f32[32,16], index: 2, kind: input, shape index: {}]
  %s3 = inlined_call_operand.vmem [shape: f32[32,16], index: 3, kind: input, shape index: {}]
  %s4 = inlined_call_operand.vmem [shape: f32[32,16], index: 4, kind: input, shape index: {}]
  %s5 = inlined_call_operand.vmem [shape: f32[32,16], index: 5, kind: output, shape index: {}]
  %s6 = sld [smem:[#allocation0]]
  $region42: #{tpu_custom_call.1} parent=0
    _
  %s8 = ssub.s32 1, %s6
  %s9 = scalar_select 0, %s8, %s6
  // Predicated region
  $region2: #{tpu_custom_call.1} parent=0 // pred_check
    _
  $region3: #{tpu_custom_call.1} parent=0 // pred_check_branch
    %11 = sbr.rel (0) target = $region5
  $region4: #{tpu_custom_call.1} parent=0 // pred_region
    _
  $region5: #{tpu_custom_call.1} parent=0 // pred_fallthru
    _
  // Predicated region
  $region6: #{tpu_custom_call.1} parent=0 // pred_check
    _
  $region7: #{tpu_custom_call.1} parent=0 // pred_check_branch
    %13 = sbr.rel (0) target = $region9
  $region8: #{tpu_custom_call.1} parent=0 // pred_region
    _
  $region9: #{tpu_custom_call.1} parent=0 // pred_fallthru
    _
  // Predicated region
  $region10: #{tpu_custom_call.1} parent=0 // pred_check
    _
  $region11: #{tpu_custom_call.1} parent=0 // pred_check_branch
    %15 = sbr.rel (0) target = $region13
  $region12: #{tpu_custom_call.1} parent=0 // pred_region
    _
  $region13: #{tpu_custom_call.1} parent=0 // pred_fallthru
    _
  // Predicated region
  $region14: #{tpu_custom_call.1} parent=0 // pred_check
    _
  $region15: #{tpu_custom_call.1} parent=0 // pred_check_branch
    %17 = sbr.rel (0) target = $region17
  $region16: #{tpu_custom_call.1} parent=0 // pred_region
    _
  $region17: #{tpu_custom_call.1} parent=0 // pred_fallthru
    _
  // Predicated region
  $region18: #{tpu_custom_call.1} parent=0 // pred_check
    _
  $region19: #{tpu_custom_call.1} parent=0 // pred_check_branch
    %19 = sbr.rel (0) target = $region21
  $region20: #{tpu_custom_call.1} parent=0 // pred_region
    _
  $region21: #{tpu_custom_call.1} parent=0 // pred_fallthru
    _
  %v20 = vld [vmem:[%s0] sm:$0xff]
  %v21 = vld [vmem:[%s0 + $0x8] sm:$0xff]
  %v22 = vld [vmem:[%s0 + $0x10] sm:$0xff]
  %v23 = vld [vmem:[%s0 + $0x18] sm:$0xff]
  %v24 = vld [vmem:[%s2] sm:$0xff]
  %v25 = vld [vmem:[%s2 + $0x8] sm:$0xff]
  %v26 = vld [vmem:[%s2 + $0x10] sm:$0xff]
  %v27 = vld [vmem:[%s2 + $0x18] sm:$0xff]
  %v28 = vld [vmem:[%s1] sm:$0xff]
  %v29 = vld [vmem:[%s1 + $0x8] sm:$0xff]
  %v30 = vld [vmem:[%s1 + $0x10] sm:$0xff]
  %v31 = vld [vmem:[%s1 + $0x18] sm:$0xff]
  %v32 = vld [vmem:[%s3] sm:$0xff]
  %v33 = vld [vmem:[%s3 + $0x8] sm:$0xff]
  %v34 = vld [vmem:[%s3 + $0x10] sm:$0xff]
  %v35 = vld [vmem:[%s3 + $0x18] sm:$0xff]
  %vm36 = vcmask 261120
  %v38 = vsel %vm36, %v28, 0
  %v41 = vsel %vm36, %v29, 0
  %v44 = vsel %vm36, %v30, 0
  %v47 = vsel %vm36, %v31, 0
  %49 = vmatprep.subr.mxu0 0.0
  %50 = vmatpush1.msra.mxu0 0.0
  %51 = vmatprep.subr.mxu0 0.0
  %52 = vmatpush1.msra.mxu0 0.0
  %53 = vmatprep.subr.mxu0 0.0
  %54 = vmatpush1.msra.mxu0 0.0
  %55 = vmatprep.subr.mxu0 0.0
  %56 = vmatpush1.msra.mxu0 0.0
  %57 = vmatprep.subr.mxu0 0.0
  %58 = vmatpush1.msra.mxu0 0.0
  %59 = vmatprep.subr.mxu0 0.0
  %60 = vmatpush1.msra.mxu0 0.0
  %61 = vmatprep.subr.mxu0 0.0
  %62 = vmatpush1.msra.mxu0 0.0
  %63 = vmatprep.subr.mxu0 0.0
  %64 = vmatpush1.msra.mxu0 0.0
  %65 = vmatprep.subr.mxu0 0.0
  %66 = vmatpush1.msra.mxu0 0.0
  %67 = vmatprep.subr.mxu0 0.0
  %68 = vmatpush1.msra.mxu0 0.0
  %69 = vmatprep.subr.mxu0 0.0
  %70 = vmatpush1.msra.mxu0 0.0
  %71 = vmatprep.subr.mxu0 0.0
  %72 = vmatpush1.msra.mxu0 0.0
  %73 = vmatprep.subr.mxu0 0.0
  %74 = vmatpush1.msra.mxu0 %v35
  %75 = vmatprep.subr.mxu0 0.0
  %76 = vmatpush1.msra.mxu0 %v34
  %77 = vmatprep.subr.mxu0 0.0
  %78 = vmatpush1.msra.mxu0 %v33
  %79 = vmatprep.subr.mxu0 0.0
  %80 = vmatpush1.msra.mxu0 %v32
  %81 = vmatprep.subr.mxu0 0.0
  %82 = vmatpush2.msra.mxu0 0.0
  %83 = vmatprep.subr.mxu0 0.0
  %84 = vmatpush2.msra.mxu0 0.0
  %85 = vmatprep.subr.mxu0 0.0
  %86 = vmatpush2.msra.mxu0 0.0
  %87 = vmatprep.subr.mxu0 0.0
  %88 = vmatpush2.msra.mxu0 0.0
  %89 = vmatprep.subr.mxu0 0.0
  %90 = vmatpush2.msra.mxu0 0.0
  %91 = vmatprep.subr.mxu0 0.0
  %92 = vmatpush2.msra.mxu0 0.0
  %93 = vmatprep.subr.mxu0 0.0
  %94 = vmatpush2.msra.mxu0 0.0
  %95 = vmatprep.subr.mxu0 0.0
  %96 = vmatpush2.msra.mxu0 0.0
  %97 = vmatprep.subr.mxu0 0.0
  %98 = vmatpush2.msra.mxu0 0.0
  %99 = vmatprep.subr.mxu0 0.0
  %100 = vmatpush2.msra.mxu0 0.0
  %101 = vmatprep.subr.mxu0 0.0
  %102 = vmatpush2.msra.mxu0 0.0
  %103 = vmatprep.subr.mxu0 0.0
  %104 = vmatpush2.msra.mxu0 0.0
  %105 = vmatprep.subr.mxu0 0.0
  %106 = vmatpush2.msra.mxu0 0.0
  %107 = vmatprep.subr.mxu0 0.0
  %108 = vmatpush2.msra.mxu0 0.0
  %109 = vmatprep.subr.mxu0 0.0
  %110 = vmatpush2.msra.mxu0 0.0
  %111 = vmatprep.subr.mxu0 0.0
  %112 = vmatpush2.msra.mxu0 0.0
  %113 = vmatprep.mubr.f32.mxu0 0.0
  %114 = vmatmul.mubr.f32.gmra.mxu0 %v38
  %v115 = vpop.f32.mrf.mxu0
  %v116 = vadd.f32 0.0, %v115
  %v117 = vpop.f32.mrf.mxu0
  %118 = vmatprep.mubr.f32.mxu0 0.0
  %119 = vmatmul.mubr.f32.gmra.mxu0 %v41
  %v120 = vpop.f32.mrf.mxu0
  %v121 = vadd.f32 0.0, %v120
  %v122 = vpop.f32.mrf.mxu0
  %123 = vmatprep.mubr.f32.mxu0 0.0
  %124 = vmatmul.mubr.f32.gmra.mxu0 %v44
  %v125 = vpop.f32.mrf.mxu0
  %v126 = vadd.f32 0.0, %v125
  %v127 = vpop.f32.mrf.mxu0
  %128 = vmatprep.mubr.f32.mxu0 0.0
  %129 = vmatmul.mubr.f32.gmra.mxu0 %v47
  %v130 = vpop.f32.mrf.mxu0
  %v131 = vadd.f32 0.0, %v130
  %v132 = vpop.f32.mrf.mxu0
  %133 = vdwg.mxu0
  %v135 = vsel %vm36, %v20, 0
  %v138 = vsel %vm36, %v21, 0
  %v141 = vsel %vm36, %v22, 0
  %v144 = vsel %vm36, %v23, 0
  %146 = vmatprep.subr.mxu0 0.0
  %147 = vmatpush1.msra.mxu0 0.0
  %148 = vmatprep.subr.mxu0 0.0
  %149 = vmatpush1.msra.mxu0 0.0
  %150 = vmatprep.subr.mxu0 0.0
  %151 = vmatpush1.msra.mxu0 0.0
  %152 = vmatprep.subr.mxu0 0.0
  %153 = vmatpush1.msra.mxu0 0.0
  %154 = vmatprep.subr.mxu0 0.0
  %155 = vmatpush1.msra.mxu0 0.0
  %156 = vmatprep.subr.mxu0 0.0
  %157 = vmatpush1.msra.mxu0 0.0
  %158 = vmatprep.subr.mxu0 0.0
  %159 = vmatpush1.msra.mxu0 0.0
  %160 = vmatprep.subr.mxu0 0.0
  %161 = vmatpush1.msra.mxu0 0.0
  %162 = vmatprep.subr.mxu0 0.0
  %163 = vmatpush1.msra.mxu0 0.0
  %164 = vmatprep.subr.mxu0 0.0
  %165 = vmatpush1.msra.mxu0 0.0
  %166 = vmatprep.subr.mxu0 0.0
  %167 = vmatpush1.msra.mxu0 0.0
  %168 = vmatprep.subr.mxu0 0.0
  %169 = vmatpush1.msra.mxu0 0.0
  %170 = vmatprep.subr.mxu0 0.0
  %171 = vmatpush1.msra.mxu0 %v27
  %172 = vmatprep.subr.mxu0 0.0
  %173 = vmatpush1.msra.mxu0 %v26
  %174 = vmatprep.subr.mxu0 0.0
  %175 = vmatpush1.msra.mxu0 %v25
  %176 = vmatprep.subr.mxu0 0.0
  %177 = vmatpush1.msra.mxu0 %v24
  %178 = vmatprep.subr.mxu0 0.0
  %179 = vmatpush2.msra.mxu0 0.0
  %180 = vmatprep.subr.mxu0 0.0
  %181 = vmatpush2.msra.mxu0 0.0
  %182 = vmatprep.subr.mxu0 0.0
  %183 = vmatpush2.msra.mxu0 0.0
  %184 = vmatprep.subr.mxu0 0.0
  %185 = vmatpush2.msra.mxu0 0.0
  %186 = vmatprep.subr.mxu0 0.0
  %187 = vmatpush2.msra.mxu0 0.0
  %188 = vmatprep.subr.mxu0 0.0
  %189 = vmatpush2.msra.mxu0 0.0
  %190 = vmatprep.subr.mxu0 0.0
  %191 = vmatpush2.msra.mxu0 0.0
  %192 = vmatprep.subr.mxu0 0.0
  %193 = vmatpush2.msra.mxu0 0.0
  %194 = vmatprep.subr.mxu0 0.0
  %195 = vmatpush2.msra.mxu0 0.0
  %196 = vmatprep.subr.mxu0 0.0
  %197 = vmatpush2.msra.mxu0 0.0
  %198 = vmatprep.subr.mxu0 0.0
  %199 = vmatpush2.msra.mxu0 0.0
  %200 = vmatprep.subr.mxu0 0.0
  %201 = vmatpush2.msra.mxu0 0.0
  %202 = vmatprep.subr.mxu0 0.0
  %203 = vmatpush2.msra.mxu0 0.0
  %204 = vmatprep.subr.mxu0 0.0
  %205 = vmatpush2.msra.mxu0 0.0
  %206 = vmatprep.subr.mxu0 0.0
  %207 = vmatpush2.msra.mxu0 0.0
  %208 = vmatprep.subr.mxu0 0.0
  %209 = vmatpush2.msra.mxu0 0.0
  %210 = vmatprep.mubr.f32.mxu0 0.0
  %211 = vmatmul.mubr.f32.gmra.mxu0 %v135
  %v212 = vpop.f32.mrf.mxu0
  %v213 = vadd.f32 %v116, %v212
  %v214 = vpop.f32.mrf.mxu0
  %215 = vmatprep.mubr.f32.mxu0 0.0
  %216 = vmatmul.mubr.f32.gmra.mxu0 %v138
  %v217 = vpop.f32.mrf.mxu0
  %v218 = vadd.f32 %v121, %v217
  %v219 = vpop.f32.mrf.mxu0
  %220 = vmatprep.mubr.f32.mxu0 0.0
  %221 = vmatmul.mubr.f32.gmra.mxu0 %v141
  %v222 = vpop.f32.mrf.mxu0
  %v223 = vadd.f32 %v126, %v222
  %v224 = vpop.f32.mrf.mxu0
  %225 = vmatprep.mubr.f32.mxu0 0.0
  %226 = vmatmul.mubr.f32.gmra.mxu0 %v144
  %v227 = vpop.f32.mrf.mxu0
  %v228 = vadd.f32 %v131, %v227
  %v229 = vpop.f32.mrf.mxu0
  %230 = vdwg.mxu0
  %p231 = scmp.eq.s32.totalorder 0, 0
  // Predicated region
  $region22: #{tpu_custom_call.1} parent=0 // pred_check
    %p232 = pneg %p231
  $region23: #{tpu_custom_call.1} parent=0 // pred_check_branch
    %234 = sbr.rel (%p232) target = $region25
  $region24: #{tpu_custom_call.1} parent=0 // pred_region
    %vm235 = vcmask 130048
    %236 = vst.msk [vmem:[#allocation2] sm:$0xff] %vm235, %v213
    %237 = vst.msk [vmem:[#allocation2 + $0x8] sm:$0xff] %vm235, %v218
    %238 = vst.msk [vmem:[#allocation2 + $0x10] sm:$0xff] %vm235, %v223
    %239 = vst.msk [vmem:[#allocation2 + $0x18] sm:$0xff] %vm235, %v228
  $region25: #{tpu_custom_call.1} parent=0 // pred_fallthru
    _
  %p240 = scmp.gt.s32.totalorder 0, 0
  // Predicated region
  $region26: #{tpu_custom_call.1} parent=0 // pred_check
    %p241 = pneg %p240
  $region27: #{tpu_custom_call.1} parent=0 // pred_check_branch
    %243 = sbr.rel (%p241) target = $region29
  $region28: #{tpu_custom_call.1} parent=0 // pred_region
    %v244 = vld [vmem:[#allocation2] sm:$0xff]
    %v245 = vld [vmem:[#allocation2 + $0x8] sm:$0xff]
    %v246 = vld [vmem:[#allocation2 + $0x10] sm:$0xff]
    %v247 = vld [vmem:[#allocation2 + $0x18] sm:$0xff]
    %v248 = vadd.f32 %v244, %v213
    %v249 = vadd.f32 %v245, %v218
    %v250 = vadd.f32 %v246, %v223
    %v251 = vadd.f32 %v247, %v228
    %vm252 = vcmask 130048
    %253 = vst.msk [vmem:[#allocation2] sm:$0xff] %vm252, %v248
    %254 = vst.msk [vmem:[#allocation2 + $0x8] sm:$0xff] %vm252, %v249
    %255 = vst.msk [vmem:[#allocation2 + $0x10] sm:$0xff] %vm252, %v250
    %256 = vst.msk [vmem:[#allocation2 + $0x18] sm:$0xff] %vm252, %v251
  $region29: #{tpu_custom_call.1} parent=0 // pred_fallthru
    _
  // Predicated region
  $region30: #{tpu_custom_call.1} parent=0 // pred_check
    %p257 = pneg %p231
  $region31: #{tpu_custom_call.1} parent=0 // pred_check_branch
    %259 = sbr.rel (%p257) target = $region33
  $region32: #{tpu_custom_call.1} parent=0 // pred_region
    %v260 = vld [vmem:[#allocation2] sm:$0xff]
    %v261 = vld [vmem:[#allocation2 + $0x8] sm:$0xff]
    %v262 = vld [vmem:[#allocation2 + $0x10] sm:$0xff]
    %v263 = vld [vmem:[#allocation2 + $0x18] sm:$0xff]
    %v264 = vld [vmem:[%s4] sm:$0xff]
    %v265 = vld [vmem:[%s4 + $0x8] sm:$0xff]
    %v266 = vld [vmem:[%s4 + $0x10] sm:$0xff]
    %v267 = vld [vmem:[%s4 + $0x18] sm:$0xff]
    %v268 = vadd.f32 %v260, %v264
    %v269 = vadd.f32 %v261, %v265
    %v270 = vadd.f32 %v262, %v266
    %v271 = vadd.f32 %v263, %v267
    %v272 = vxor.u32 %v268, 2147483648
    %v273 = vxor.u32 %v269, 2147483648
    %v274 = vxor.u32 %v270, 2147483648
    %v275 = vxor.u32 %v271, 2147483648
    %v276 = vmul.f32 %v272, 1.442695
    %v277 = vpow.pop %v276
    %v278 = vmul.f32 %v273, 1.442695
    %v279 = vpow.pop %v278
    %v280 = vmul.f32 %v274, 1.442695
    %v281 = vpow.pop %v280
    %v282 = vmul.f32 %v275, 1.442695
    %v283 = vpow.pop %v282
    %v284 = vadd.f32 %v277, 1.0
    %v285 = vadd.f32 %v279, 1.0
    %v286 = vadd.f32 %v281, 1.0
    %v287 = vadd.f32 %v283, 1.0
    %v288 = vrcp.pop %v284
    %v289 = vmul.f32 1.0, %v288
    %v290 = vrcp.pop %v285
    %v291 = vmul.f32 1.0, %v290
    %v292 = vrcp.pop %v286
    %v293 = vmul.f32 1.0, %v292
    %v294 = vrcp.pop %v287
    %v295 = vmul.f32 1.0, %v294
    %vm296 = vcmask 130048
    %297 = vst.msk [vmem:[%s5] sm:$0xff] %vm296, %v289
    %298 = vst.msk [vmem:[%s5 + $0x8] sm:$0xff] %vm296, %v291
    %299 = vst.msk [vmem:[%s5 + $0x10] sm:$0xff] %vm296, %v293
    %300 = vst.msk [vmem:[%s5 + $0x18] sm:$0xff] %vm296, %v295
  $region33: #{tpu_custom_call.1} parent=0 // pred_fallthru
    _
  // Predicated region
  $region34: #{tpu_custom_call.1} parent=0 // pred_check
    _
  $region35: #{tpu_custom_call.1} parent=0 // pred_check_branch
    %302 = sbr.rel (0) target = $region37
  $region36: #{tpu_custom_call.1} parent=0 // pred_region
    _
  $region37: #{tpu_custom_call.1} parent=0 // pred_fallthru
    _
  // Predicated region
  $region38: #{tpu_custom_call.1} parent=0 // pred_check
    _
  $region39: #{tpu_custom_call.1} parent=0 // pred_check_branch
    %304 = sbr.rel (0) target = $region41
  $region40: #{tpu_custom_call.1} parent=0 // pred_region
    _
  $region41: #{tpu_custom_call.1} parent=0 // pred_fallthru
    _

</llo_original>
